<compile_context>
chip_gen: v7x
topology: tpu7x:2x2x1
jax: 0.10.0
libtpu: 0.0.40
codegen_flags: <defaults>
</compile_context>

<pallas_src>
import jax
import jax.numpy as jnp
from jax.experimental import pallas as pl
from jax.experimental.pallas import tpu as pltpu


# ----------------------------------------------------------------------------
# Hardware-aware helpers
# ----------------------------------------------------------------------------
def _vmem_limit_bytes():
    """Scoped-VMEM limit: ~3/4 of physical VMEM, capped at 96 MiB.

    v5e/v6e (128 MiB physical) -> 96 MiB; v7x (64 MiB physical) -> 48 MiB.
    Falls back to 48 MiB if the query is unavailable.
    """
    try:
        cap = int(getattr(pltpu.get_tpu_info(), "vmem_capacity_bytes", 64 << 20))
    except Exception:
        cap = 64 << 20
    return int(min(cap * 3 // 4, 96 << 20))


def _footprint_bytes(t_out, tk, in_itemsize, out_itemsize):
    # Double-buffered A (t_out, tk) + B (tk, t_out) input tiles, double-buffered
    # output tile, plus the resident f32 accumulator.
    return (2 * (t_out * tk + tk * t_out) * in_itemsize
            + 2 * t_out * t_out * out_itemsize
            + t_out * t_out * 4)


def _largest_divisor(n, candidates):
    for c in candidates:
        if n % c == 0:
            return c
    return 128


def _pick_tiles(n_pad, in_itemsize, out_itemsize, vmem_limit):
    """Pick (t_out, tk): MXU-aligned, VMEM-bounded, megacore-friendly."""
    t_out = _largest_divisor(n_pad, (512, 256, 128))
    # Keep the parallel output axes at extent >= 2 when possible so v7x's two
    # TensorCores both get work.
    while t_out > 128 and (n_pad // t_out) < 2 and n_pad % (t_out // 2) == 0:
        t_out //= 2
    # tk >= t_out: fewer, longer reduction steps (less per-step fixed cost and
    # fewer accumulator read-modify-writes).
    tk = max(_largest_divisor(n_pad, (1024, 512, 256, 128)), t_out)
    while tk > t_out and _footprint_bytes(t_out, tk, in_itemsize, out_itemsize) > vmem_limit:
        tk //= 2
    return t_out, tk


def _row_block(n, itemsize, budget_bytes=2 << 20):
    """Row-block for the elementwise add prologue (full lane-dense width)."""
    tr = min(n, max(128, budget_bytes // max(1, n * itemsize)))
    tr = max(128, (tr // 128) * 128)
    while n % tr:
        tr -= 128
    return tr


# ----------------------------------------------------------------------------
# Small path: whole problem in one gridless kernel (module default is 4x4).
# ----------------------------------------------------------------------------
def _add_matmul_small_kernel(x_ref, y_ref, o_ref):
    # Add in f32 (v5e VPU has no bf16 ALU), cast back so the MXU sees the
    # native operand dtype.  All casts are no-ops for f32 inputs.
    m = (x_ref[...].astype(jnp.float32) + y_ref[...].astype(jnp.float32)).astype(x_ref.dtype)
    o_ref[...] = jnp.dot(m, m, preferred_element_type=jnp.float32).astype(o_ref.dtype)


def _add_matmul_small(x, y):
    n = x.shape[0]
    return pl.pallas_call(
        _add_matmul_small_kernel,
        out_shape=jax.ShapeDtypeStruct((n, n), x.dtype),
        in_specs=[
            pl.BlockSpec(memory_space=pltpu.MemorySpace.VMEM),
            pl.BlockSpec(memory_space=pltpu.MemorySpace.VMEM),
        ],
        out_specs=pl.BlockSpec(memory_space=pltpu.MemorySpace.VMEM),
        cost_estimate=pl.CostEstimate(
            flops=2 * n * n * n + n * n,
            transcendentals=0,
            bytes_accessed=3 * n * n * x.dtype.itemsize,
        ),
    )(x, y)


# ----------------------------------------------------------------------------
# Prologue: m = x + y, streamed once through HBM (bandwidth-bound, trivial).
# ----------------------------------------------------------------------------
def _add_kernel(x_ref, y_ref, m_ref):
    m_ref[...] = (x_ref[...].astype(jnp.float32)
                  + y_ref[...].astype(jnp.float32)).astype(m_ref.dtype)


def _precompute_m(x, y, m_dtype):
    n = x.shape[0]
    tr = _row_block(n, jnp.dtype(m_dtype).itemsize)
    grid = (n // tr,)
    return pl.pallas_call(
        _add_kernel,
        out_shape=jax.ShapeDtypeStruct((n, n), m_dtype),
        grid=grid,
        in_specs=[
            pl.BlockSpec((tr, n), lambda i: (i, 0)),
            pl.BlockSpec((tr, n), lambda i: (i, 0)),
        ],
        out_specs=pl.BlockSpec((tr, n), lambda i: (i, 0)),
        compiler_params=pltpu.CompilerParams(dimension_semantics=("parallel",)),
        cost_estimate=pl.CostEstimate(
            flops=n * n,
            transcendentals=0,
            bytes_accessed=2 * n * n * x.dtype.itemsize
            + n * n * jnp.dtype(m_dtype).itemsize,
        ),
    )(x, y)


# ----------------------------------------------------------------------------
# Tiled matmul: out = m @ m, two input streams, resident f32 accumulator.
# ----------------------------------------------------------------------------
def _matmul_kernel(a_ref, b_ref, o_ref, acc_ref):
    k = pl.program_id(2)

    @pl.when(k == 0)
    def _():
        acc_ref[...] = jnp.zeros_like(acc_ref)

    acc_ref[...] += jnp.dot(a_ref[...], b_ref[...], preferred_element_type=jnp.float32)

    @pl.when(k == pl.num_programs(2) - 1)
    def _():
        o_ref[...] = acc_ref[...].astype(o_ref.dtype)


def _tiled_matmul(m, out_dtype, t_out, tk, vmem_limit):
    n = m.shape[0]
    grid = (n // t_out, n // t_out, n // tk)
    in_item = m.dtype.itemsize
    out_item = jnp.dtype(out_dtype).itemsize
    # Actual streamed traffic: A-view re-read once per j-block, B-view once per
    # i-block, output written once.
    bytes_accessed = (n * n * (n // t_out) * in_item          # A-view
                      + n * n * (n // t_out) * in_item        # B-view
                      + n * n * out_item)                     # output
    return pl.pallas_call(
        _matmul_kernel,
        out_shape=jax.ShapeDtypeStruct((n, n), out_dtype),
        grid=grid,
        in_specs=[
            pl.BlockSpec((t_out, tk), lambda i, j, k: (i, k)),   # A-view of m
            pl.BlockSpec((tk, t_out), lambda i, j, k: (k, j)),   # B-view of m
        ],
        out_specs=pl.BlockSpec((t_out, t_out), lambda i, j, k: (i, j)),
        scratch_shapes=[pltpu.VMEM((t_out, t_out), jnp.float32)],
        compiler_params=pltpu.CompilerParams(
            dimension_semantics=("parallel", "parallel", "arbitrary"),
            vmem_limit_bytes=vmem_limit,
        ),
        cost_estimate=pl.CostEstimate(
            flops=2 * n * n * n, transcendentals=0, bytes_accessed=bytes_accessed,
        ),
    )(m, m)


# ----------------------------------------------------------------------------
# Dispatcher
# ----------------------------------------------------------------------------
def add_matmul(x: jax.Array, y: jax.Array, *, use_bf16_matmul: bool = False) -> jax.Array:
    assert x.shape == y.shape and x.ndim == 2 and x.shape[0] == x.shape[1], (
        "AddMatmulModule expects square matrices of matching shape"
    )
    n = x.shape[0]
    out_dtype = x.dtype

    if n <= 512:
        # Tiny / small problems: single VMEM-resident gridless kernel
        # (<= ~3 MiB total at n=512/f32, safe on every generation).
        return _add_matmul_small(x, y)

    # Large problems: pad up to a multiple of 128 (zero padding is exact for
    # (x+y)@(x+y)), precompute m once, then the 2-stream tiled matmul.
    n_pad = ((n + 127) // 128) * 128
    if n_pad != n:
        pad = n_pad - n
        x = jnp.pad(x, ((0, pad), (0, pad)))
        y = jnp.pad(y, ((0, pad), (0, pad)))

    m_dtype = jnp.bfloat16 if use_bf16_matmul else x.dtype
    vmem_limit = _vmem_limit_bytes()
    t_out, tk = _pick_tiles(
        n_pad, jnp.dtype(m_dtype).itemsize, jnp.dtype(out_dtype).itemsize, vmem_limit
    )

    m = _precompute_m(x, y, m_dtype)
    out = _tiled_matmul(m, out_dtype, t_out, tk, vmem_limit)

    if n_pad != n:
        out = out[:n, :n]
    return out


def add_matmul_ref(x, y):
    m = x + y
    return jnp.matmul(m, m, precision=jax.lax.Precision.HIGHEST)


if __name__ == "__main__":
    # 1) Module shapes: AddMatmulModule.input_shapes() == [(4, 4), (4, 4)].
    kx, ky = jax.random.split(jax.random.PRNGKey(0))
    x = jax.random.normal(kx, (4, 4), dtype=jnp.float32)
    y = jax.random.normal(ky, (4, 4), dtype=jnp.float32)
    out = add_matmul(x, y)
    jax.block_until_ready(out)
    assert jnp.allclose(out, add_matmul_ref(x, y), atol=1e-5, rtol=1e-5), (
        "small-path mismatch vs reference"
    )

    # 2) Tiled path with large MXU-aligned tiles (n=1024 -> 512 output tiles,
    #    tk=1024, 2x2x1 grid).
    kx2, ky2 = jax.random.split(jax.random.PRNGKey(1))
    xl = jax.random.normal(kx2, (1024, 1024), dtype=jnp.float32)
    yl = jax.random.normal(ky2, (1024, 1024), dtype=jnp.float32)
    outl = add_matmul(xl, yl)
    jax.block_until_ready(outl)
    refl = add_matmul_ref(xl, yl)
    rel = jnp.linalg.norm(outl - refl) / (jnp.linalg.norm(refl) + 1e-30)
    assert float(rel) < 2e-2, f"tiled-path mismatch (rel err {float(rel)})"

    # 3) Awkward N (not a multiple of 128): exercises the zero-pad tiled path.
    kx3, ky3 = jax.random.split(jax.random.PRNGKey(2))
    xa = jax.random.normal(kx3, (600, 600), dtype=jnp.float32)
    ya = jax.random.normal(ky3, (600, 600), dtype=jnp.float32)
    outa = add_matmul(xa, ya)
    jax.block_until_ready(outa)
    refa = add_matmul_ref(xa, ya)
    rela = jnp.linalg.norm(outa - refa) / (jnp.linalg.norm(refa) + 1e-30)
    assert float(rela) < 2e-2, f"padded-path mismatch (rel err {float(rela)})"

    print("KERNEL_OK")
</pallas_src>

<mosaic_0001>
module attributes {stable_mosaic.version = 11 : i64} {
  func.func @_add_matmul_small_kernel(%arg0: memref<4x4xf32, #tpu.memory_space<vmem>>, %arg1: memref<4x4xf32, #tpu.memory_space<vmem>>, %arg2: memref<4x4xf32, #tpu.memory_space<vmem>>) attributes {dimension_semantics = [], scalar_prefetch = 0 : i64, scratch_operands = 0 : i64, tpu.core_type = #tpu.core_type<tc>} {
    %c0 = arith.constant 0 : index
    %c0_0 = arith.constant 0 : index
    %0 = vector.load %arg0[%c0, %c0_0] : memref<4x4xf32, #tpu.memory_space<vmem>>, vector<4x4xf32>
    %c0_1 = arith.constant 0 : index
    %c0_2 = arith.constant 0 : index
    %1 = vector.load %arg1[%c0_1, %c0_2] : memref<4x4xf32, #tpu.memory_space<vmem>>, vector<4x4xf32>
    %2 = arith.addf %0, %1 : vector<4x4xf32>
    %cst = arith.constant dense<0.000000e+00> : vector<4x4xf32>
    %3 = tpu.matmul %2, %2, %cst {dimension_numbers = #tpu.dot_dimension_numbers<[1], [0], [0], [1], [0, 0, 1, 1], [], []>} : vector<4x4xf32>, vector<4x4xf32>, vector<4x4xf32> -> vector<4x4xf32>
    %c0_3 = arith.constant 0 : index
    %c0_4 = arith.constant 0 : index
    %4 = vector.load %arg2[%c0_3, %c0_4] : memref<4x4xf32, #tpu.memory_space<vmem>>, vector<4x4xf32>
    tpu.vector_store %arg2[%c0_3, %c0_4], %3 {strides = array<i32>} : memref<4x4xf32, #tpu.memory_space<vmem>>, vector<4x4xf32>,
    return
  }
}

</mosaic_0001>

<llo_original>
// kernel: tpu_custom_call.1
$region0: #{tpu_custom_call.1}
  #allocation0 [shape = 'u32[]', space=smem, size = 0x4, offset = 0x4, fixed_abs, tag = 'smem constant byte address 0x4 - core index']
  #allocation1 [shape = 'u32[144,128]{1,0:T(1,128)}', space=vmem, size = 0x12000, scoped, tag = 'internal scratch']
  %s0 = inlined_call_operand.hbm [shape: f32[4,4], index: 0, kind: input, shape index: {}]
  %s1 = inlined_call_operand.hbm [shape: f32[4,4], index: 1, kind: input, shape index: {}]
  %s2 = inlined_call_operand.hbm [shape: f32[4,4], index: 2, kind: output, shape index: {}]
  %s3 = sld [smem:[#allocation0]]
  $region26: #{tpu_custom_call.1} parent=0
    _
  %s5 = ssub.s32 1, %s3
  %s6 = scalar_select 0, %s5, %s3
  $region1: #{tpu_custom_call.1} parent=0
    #allocation2 [shape = 'u8[2048]{0}', space=vmem, size = 0x800, scoped, tag = 'input window, operand 0, single buffered']
    #allocation3 [shape = 's32[1]{0}', space=sflag, size = 0x4, scoped, tag = 'scoped memory for tpu_custom_call.1']
    #allocation4 [shape = 's32[1]{0}', space=sflag, size = 0x4, scoped, tag = 'scoped memory for tpu_custom_call.1']
    #allocation5 [shape = 'u8[2048]{0}', space=vmem, size = 0x800, scoped, tag = 'input window, operand 1, single buffered']
    #allocation6 [shape = 's32[1]{0}', space=sflag, size = 0x4, scoped, tag = 'scoped memory for tpu_custom_call.1']
    #allocation7 [shape = 'u8[2048]{0}', space=vmem, size = 0x800, scoped, tag = 'output window, operand 0, single buffered']
    %7 = vsyncpa [#allocation3], 0
    %8 = vsyncpa [#allocation6], 0
    %9 = vsyncpa [#allocation4], 0
    // Predicated region
    $region2: #{tpu_custom_call.1} parent=1 // pred_check
      _
    $region3: #{tpu_custom_call.1} parent=1 // pred_check_branch
      %11 = sbr.rel (0) target = $region5
    $region4: #{tpu_custom_call.1} parent=1 // pred_region
      %s13 = ssub.s32 64, 64
      %14 = vsyncadd [#allocation3], %s13
      %s16 = sshll.u32 [#allocation2], 4
      %s17 = int_to_ptr.vmem [resolvable:$true] %s16
      %19 = dma.hbm_to_vmem [thread:$0]  %s0, 64, %s17, [#allocation3]
    $region5: #{tpu_custom_call.1} parent=1 // pred_fallthru
      _
    // Predicated region
    $region6: #{tpu_custom_call.1} parent=1 // pred_check
      _
    $region7: #{tpu_custom_call.1} parent=1 // pred_check_branch
      %21 = sbr.rel (0) target = $region9
    $region8: #{tpu_custom_call.1} parent=1 // pred_region
      %s23 = ssub.s32 64, 64
      %24 = vsyncadd [#allocation6], %s23
      %s26 = sshll.u32 [#allocation5], 4
      %s27 = int_to_ptr.vmem [resolvable:$true] %s26
      %29 = dma.hbm_to_vmem [thread:$0]  %s1, 64, %s27, [#allocation6]
    $region9: #{tpu_custom_call.1} parent=1 // pred_fallthru
      _
    // Predicated region
    $region10: #{tpu_custom_call.1} parent=1 // pred_check
      _
    $region11: #{tpu_custom_call.1} parent=1 // pred_check_branch
      %31 = sbr.rel (0) target = $region13
    $region12: #{tpu_custom_call.1} parent=1 // pred_region
      %32 = dma.done [#allocation3], 64
    $region13: #{tpu_custom_call.1} parent=1 // pred_fallthru
      _
    // Predicated region
    $region14: #{tpu_custom_call.1} parent=1 // pred_check
      _
    $region15: #{tpu_custom_call.1} parent=1 // pred_check_branch
      %34 = sbr.rel (0) target = $region17
    $region16: #{tpu_custom_call.1} parent=1 // pred_region
      %35 = dma.done [#allocation6], 64
    $region17: #{tpu_custom_call.1} parent=1 // pred_fallthru
      _
    %v36 = vld [vmem:[#allocation2] sm:$0xf]
    %v37 = vld [vmem:[#allocation5] sm:$0xf]
    %v38 = vadd.f32 %v36, %v37
    %vm39 = vcmask 31744
    %v41 = vsel %vm39, %v38, 0
    %vm43 = vcmask 1043456
    %v44 = vsel %vm43, %v38, 0
    %46 = vmatprep.subr.mxu0 0.0
    %47 = vmatpush1.msra.mxu0 %v44
    %48 = vmatprep.subr.mxu0 0.0
    %49 = vmatpush1.msra.mxu0 0.0
    %50 = vmatprep.subr.mxu0 0.0
    %51 = vmatpush1.msra.mxu0 0.0
    %52 = vmatprep.subr.mxu0 0.0
    %53 = vmatpush1.msra.mxu0 0.0
    %54 = vmatprep.subr.mxu0 0.0
    %55 = vmatpush1.msra.mxu0 0.0
    %56 = vmatprep.subr.mxu0 0.0
    %57 = vmatpush1.msra.mxu0 0.0
    %58 = vmatprep.subr.mxu0 0.0
    %59 = vmatpush1.msra.mxu0 0.0
    %60 = vmatprep.subr.mxu0 0.0
    %61 = vmatpush1.msra.mxu0 0.0
    %62 = vmatprep.subr.mxu0 0.0
    %63 = vmatpush1.msra.mxu0 0.0
    %64 = vmatprep.subr.mxu0 0.0
    %65 = vmatpush1.msra.mxu0 0.0
    %66 = vmatprep.subr.mxu0 0.0
    %67 = vmatpush1.msra.mxu0 0.0
    %68 = vmatprep.subr.mxu0 0.0
    %69 = vmatpush1.msra.mxu0 0.0
    %70 = vmatprep.subr.mxu0 0.0
    %71 = vmatpush1.msra.mxu0 0.0
    %72 = vmatprep.subr.mxu0 0.0
    %73 = vmatpush1.msra.mxu0 0.0
    %74 = vmatprep.subr.mxu0 0.0
    %75 = vmatpush1.msra.mxu0 0.0
    %76 = vmatprep.subr.mxu0 0.0
    %77 = vmatpush1.msra.mxu0 0.0
    %78 = vmatprep.subr.mxu0 0.0
    %79 = vmatpush1.msra.mxu0 0.0
    %80 = vmatprep.subr.mxu0 0.0
    %81 = vmatpush1.msra.mxu0 0.0
    %82 = vmatprep.subr.mxu0 0.0
    %83 = vmatpush1.msra.mxu0 0.0
    %84 = vmatprep.subr.mxu0 0.0
    %85 = vmatpush1.msra.mxu0 0.0
    %86 = vmatprep.subr.mxu0 0.0
    %87 = vmatpush1.msra.mxu0 0.0
    %88 = vmatprep.subr.mxu0 0.0
    %89 = vmatpush1.msra.mxu0 0.0
    %90 = vmatprep.subr.mxu0 0.0
    %91 = vmatpush1.msra.mxu0 0.0
    %92 = vmatprep.subr.mxu0 0.0
    %93 = vmatpush1.msra.mxu0 0.0
    %94 = vmatprep.subr.mxu0 0.0
    %95 = vmatpush1.msra.mxu0 0.0
    %96 = vmatprep.subr.mxu0 0.0
    %97 = vmatpush1.msra.mxu0 0.0
    %98 = vmatprep.subr.mxu0 0.0
    %99 = vmatpush1.msra.mxu0 0.0
    %100 = vmatprep.subr.mxu0 0.0
    %101 = vmatpush1.msra.mxu0 0.0
    %102 = vmatprep.subr.mxu0 0.0
    %103 = vmatpush1.msra.mxu0 0.0
    %104 = vmatprep.subr.mxu0 0.0
    %105 = vmatpush1.msra.mxu0 0.0
    %106 = vmatprep.subr.mxu0 0.0
    %107 = vmatpush1.msra.mxu0 0.0
    %108 = vmatprep.subr.mxu0 0.0
    %109 = vmatpush1.msra.mxu0 0.0
    %110 = vmatprep.mubr.f32.mxu0 0.0
    %111 = vmatmul.mubr.f32.gmra.mrb[0].mxu0 %v41
    %v112 = vpop.f32.mrb[0].mxu0
    %v113 = vadd.f32 0.0, %v112
    %v114 = vpop.f32.mrb[0].mxu0
    %115 = vdwg.mxu0
    %vm116 = vcmask 27648
    %117 = vst.msk [vmem:[#allocation7] sm:$0xf] %vm116, %v113
    // Predicated region
    $region18: #{tpu_custom_call.1} parent=1 // pred_check
      _
    $region19: #{tpu_custom_call.1} parent=1 // pred_check_branch
      %119 = sbr.rel (0) target = $region21
    $region20: #{tpu_custom_call.1} parent=1 // pred_region
      %s121 = ssub.s32 64, 64
      %122 = vsyncadd [#allocation4], %s121
      %s124 = sshll.u32 [#allocation7], 4
      %s125 = int_to_ptr.vmem [resolvable:$true] %s124
      %127 = dma.vmem_to_hbm [thread:$0]  %s125, 64, %s2, [#allocation4]
    $region21: #{tpu_custom_call.1} parent=1 // pred_fallthru
      _
    // Predicated region
    $region22: #{tpu_custom_call.1} parent=1 // pred_check
      _
    $region23: #{tpu_custom_call.1} parent=1 // pred_check_branch
      %129 = sbr.rel (0) target = $region25
    $region24: #{tpu_custom_call.1} parent=1 // pred_region
      %130 = dma.done [#allocation4], 64
    $region25: #{tpu_custom_call.1} parent=1 // pred_fallthru
      _
    %131 = vsyncpa [#allocation3], 1
    %132 = vsyncpa [#allocation6], 1
    %133 = vsyncpa [#allocation4], 1

</llo_original>
